<compile_context>
chip_gen: v6e
topology: v6e:2x2x1
jax: 0.10.0
libtpu: 0.0.40
codegen_flags: <defaults>
</compile_context>

<pallas_src>
import functools

import jax
import jax.numpy as jnp
from jax.experimental import pallas as pl
from jax.experimental.pallas import tpu as pltpu


def _round_up(n, m):
    return ((n + m - 1) // m) * m


def classblock_kernel(x_ref, w1_ref, shift_ref, w2_ref, b2_ref, o_ref, *,
                      w_lrelu):
    # ----- add_block: Linear + folded BatchNorm1d (eval). bf16 in, f32 acc.
    h = jnp.dot(x_ref[...], w1_ref[...], preferred_element_type=jnp.float32)
    h = h + shift_ref[...]                       # folded (b1, BN) shift, f32
    h = jnp.where(h >= 0, h, w_lrelu * h)        # LeakyReLU(0.2), f32
    # Dropout(p=0.5) is identity at inference time.
    # ----- classifier: Linear. bf16 in, f32 acc.
    out = jnp.dot(h.astype(w2_ref.dtype), w2_ref[...],
                  preferred_element_type=jnp.float32)
    o_ref[...] = (out + b2_ref[...]).astype(o_ref.dtype)


def classblock_forward(x, params, *, w_lrelu=0.2, eps=1e-5):
    """x: (B, input_dim) float32 -> (B, class_num) float32 (eval semantics)."""
    w1, b1, bn_gamma, bn_beta, bn_mean, bn_var, w2, b2 = params
    B, D = x.shape
    H = w1.shape[1]
    C = w2.shape[1]

    # ---- host-side fold: BN(eval) + first bias into the first matmul.
    scale = bn_gamma / jnp.sqrt(bn_var + eps)              # (H,)
    w1_eff = w1 * scale[None, :]                           # (D, H)
    shift = (b1 - bn_mean) * scale + bn_beta               # (H,)

    # ---- lane-dense output: pad class dim to a multiple of 128.
    C_pad = _round_up(C, 128)
    w2_p = jnp.pad(w2, ((0, 0), (0, C_pad - C)))
    b2_p = jnp.pad(b2, (0, C_pad - C))

    # ---- batch padding / tiling: >= 8 sublanes, 128-row tiles for big B.
    TB = 128 if B >= 128 else _round_up(B, 8)
    B_pad = _round_up(B, TB)
    x_p = jnp.pad(x, ((0, B_pad - B), (0, 0)))
    grid_b = B_pad // TB

    # ---- bf16 matmul operands; elementwise terms stay f32.
    x_bf = x_p.astype(jnp.bfloat16)
    w1_bf = w1_eff.astype(jnp.bfloat16)
    w2_bf = w2_p.astype(jnp.bfloat16)
    shift_row = shift.reshape(1, H).astype(jnp.float32)
    b2_row = b2_p.reshape(1, C_pad).astype(jnp.float32)

    kernel = functools.partial(classblock_kernel, w_lrelu=w_lrelu)

    flops = 2 * B_pad * (D * H + H * C_pad)
    bytes_accessed = (x_bf.size * 2 + w1_bf.size * 2 + w2_bf.size * 2
                      + shift_row.size * 4 + b2_row.size * 4
                      + B_pad * C_pad * 4)

    out = pl.pallas_call(
        kernel,
        out_shape=jax.ShapeDtypeStruct((B_pad, C_pad), jnp.float32),
        grid=(grid_b,),
        in_specs=[
            pl.BlockSpec((TB, D), lambda i: (i, 0)),      # x tile (pipelined)
            pl.BlockSpec((D, H), lambda i: (0, 0)),       # W1' (VMEM-resident)
            pl.BlockSpec((1, H), lambda i: (0, 0)),       # folded shift
            pl.BlockSpec((H, C_pad), lambda i: (0, 0)),   # W2 (VMEM-resident)
            pl.BlockSpec((1, C_pad), lambda i: (0, 0)),   # b2
        ],
        out_specs=pl.BlockSpec((TB, C_pad), lambda i: (i, 0)),
        compiler_params=pltpu.CompilerParams(
            dimension_semantics=("parallel",)),
        cost_estimate=pl.CostEstimate(
            flops=flops, transcendentals=0, bytes_accessed=bytes_accessed),
    )(x_bf, w1_bf, shift_row, w2_bf, b2_row)

    return out[:B, :C]


def init_params(key, input_dim, class_num, num_bottleneck):
    """Deterministic synthetic init mirroring the PyTorch module's shapes
    (weights_init_kaiming / weights_init_classifier styles, approximately)."""
    k1, k2, k3, _, _ = jax.random.split(key, 5)
    # add_block Linear: kaiming-normal, fan_out mode -> std = sqrt(2/fan_out)
    w1 = jax.random.normal(k1, (input_dim, num_bottleneck), jnp.float32) \
         * jnp.sqrt(2.0 / num_bottleneck)
    b1 = jnp.zeros((num_bottleneck,), jnp.float32)
    # BatchNorm1d: weight ~ N(1, 0.01), bias = 0, running stats = (0, 1)
    bn_gamma = 1.0 + 0.01 * jax.random.normal(k2, (num_bottleneck,), jnp.float32)
    bn_beta = jnp.zeros((num_bottleneck,), jnp.float32)
    bn_mean = jnp.zeros((num_bottleneck,), jnp.float32)
    bn_var = jnp.ones((num_bottleneck,), jnp.float32)
    # classifier Linear: weight ~ N(0, 0.001), bias = 0
    w2 = 0.001 * jax.random.normal(k3, (num_bottleneck, class_num), jnp.float32)
    b2 = jnp.zeros((class_num,), jnp.float32)
    return (w1, b1, bn_gamma, bn_beta, bn_mean, bn_var, w2, b2)


def reference_forward(x, params, *, w_lrelu=0.2):
    """Plain-JAX f32 reference for correctness check (eval semantics)."""
    w1, b1, g, bta, mu, var, w2, b2 = params
    eps = 1e-5
    h = x @ w1 + b1
    h = (h - mu) / jnp.sqrt(var + eps) * g + bta
    h = jnp.where(h >= 0, h, w_lrelu * h)
    return h @ w2 + b2


if __name__ == "__main__":
    B, input_dim, num_bottleneck, class_num = 2, 32, 512, 16
    key = jax.random.PRNGKey(0)
    kx, kp = jax.random.split(key)
    x = jax.random.normal(kx, (B, input_dim), jnp.float32)
    params = init_params(kp, input_dim, class_num, num_bottleneck)

    out = classblock_forward(x, params)
    out = jax.block_until_ready(out)

    ref = reference_forward(x, params)
    assert out.shape == (B, class_num)
    # bf16 matmul operands (f32 accumulation) -> tolerance loosened vs pure f32.
    assert jnp.allclose(out, ref, atol=2e-3, rtol=2e-2), \
        f"max err {jnp.max(jnp.abs(out - ref))}"
    print("KERNEL_OK")
</pallas_src>

<mosaic_0001>
module attributes {stable_mosaic.version = 11 : i64} {
  func.func @classblock_kernel(%arg0: i32, %arg1: memref<8x32xbf16, #tpu.memory_space<vmem>>, %arg2: memref<32x512xbf16, #tpu.memory_space<vmem>>, %arg3: memref<1x512xf32, #tpu.memory_space<vmem>>, %arg4: memref<512x128xbf16, #tpu.memory_space<vmem>>, %arg5: memref<1x128xf32, #tpu.memory_space<vmem>>, %arg6: memref<8x128xf32, #tpu.memory_space<vmem>>) attributes {dimension_semantics = [#tpu.dimension_semantics<parallel>], iteration_bounds = array<i64: 1>, scalar_prefetch = 0 : i64, scratch_operands = 0 : i64, tpu.core_type = #tpu.core_type<tc>, window_params = [{transform_indices = @transform_0, window_bounds = array<i64: 8, 32>}, {pipeline_mode = #tpu.pipeline_mode<synchronous>, transform_indices = @transform_1, window_bounds = array<i64: 32, 512>}, {pipeline_mode = #tpu.pipeline_mode<synchronous>, transform_indices = @transform_2, window_bounds = array<i64: 1, 512>}, {pipeline_mode = #tpu.pipeline_mode<synchronous>, transform_indices = @transform_3, window_bounds = array<i64: 512, 128>}, {pipeline_mode = #tpu.pipeline_mode<synchronous>, transform_indices = @transform_4, window_bounds = array<i64: 1, 128>}, {transform_indices = @transform_5, window_bounds = array<i64: 8, 128>}]} {
    %c0 = arith.constant 0 : index
    %c0_0 = arith.constant 0 : index
    %0 = vector.load %arg1[%c0, %c0_0] : memref<8x32xbf16, #tpu.memory_space<vmem>>, vector<8x32xbf16>
    %c0_1 = arith.constant 0 : index
    %c0_2 = arith.constant 0 : index
    %1 = vector.load %arg2[%c0_1, %c0_2] : memref<32x512xbf16, #tpu.memory_space<vmem>>, vector<32x512xbf16>
    %cst = arith.constant dense<0.000000e+00> : vector<8x512xf32>
    %2 = tpu.matmul %0, %1, %cst {dimension_numbers = #tpu.dot_dimension_numbers<[1], [0], [0], [1], [0, 0, 1, 1], [], []>} : vector<8x32xbf16>, vector<32x512xbf16>, vector<8x512xf32> -> vector<8x512xf32>
    %c0_3 = arith.constant 0 : index
    %c0_4 = arith.constant 0 : index
    %3 = vector.load %arg3[%c0_3, %c0_4] : memref<1x512xf32, #tpu.memory_space<vmem>>, vector<1x512xf32>
    %4 = vector.broadcast %3 : vector<1x512xf32> to vector<8x512xf32>
    %5 = arith.addf %2, %4 : vector<8x512xf32>
    %cst_5 = arith.constant 0.000000e+00 : f32
    %6 = vector.broadcast %cst_5 : f32 to vector<8x512xf32>
    %7 = arith.cmpf oge, %5, %6 : vector<8x512xf32>
    %cst_6 = arith.constant 2.000000e-01 : f32
    %8 = vector.broadcast %cst_6 : f32 to vector<8x512xf32>
    %9 = arith.mulf %8, %5 : vector<8x512xf32>
    %10 = arith.select %7, %5, %9 : vector<8x512xi1>, vector<8x512xf32>
    %11 = arith.truncf %10 : vector<8x512xf32> to vector<8x512xbf16>
    %c0_7 = arith.constant 0 : index
    %c0_8 = arith.constant 0 : index
    %12 = vector.load %arg4[%c0_7, %c0_8] : memref<512x128xbf16, #tpu.memory_space<vmem>>, vector<512x128xbf16>
    %cst_9 = arith.constant dense<0.000000e+00> : vector<8x128xf32>
    %13 = tpu.matmul %11, %12, %cst_9 {dimension_numbers = #tpu.dot_dimension_numbers<[1], [0], [0], [1], [0, 0, 1, 1], [], []>} : vector<8x512xbf16>, vector<512x128xbf16>, vector<8x128xf32> -> vector<8x128xf32>
    %c0_10 = arith.constant 0 : index
    %c0_11 = arith.constant 0 : index
    %14 = vector.load %arg5[%c0_10, %c0_11] : memref<1x128xf32, #tpu.memory_space<vmem>>, vector<1x128xf32>
    %15 = vector.broadcast %14 : vector<1x128xf32> to vector<8x128xf32>
    %16 = arith.addf %13, %15 : vector<8x128xf32>
    %c0_12 = arith.constant 0 : index
    %c0_13 = arith.constant 0 : index
    %17 = vector.load %arg6[%c0_12, %c0_13] : memref<8x128xf32, #tpu.memory_space<vmem>>, vector<8x128xf32>
    tpu.vector_store %arg6[%c0_12, %c0_13], %16 {strides = array<i32>} : memref<8x128xf32, #tpu.memory_space<vmem>>, vector<8x128xf32>,
    return
  }
  func.func @transform_0(%arg0: i32) -> (i32, i32) {
    %c0_i32 = arith.constant 0 : i32
    %c0_i32_0 = arith.constant 0 : i32
    return %arg0, %c0_i32 : i32, i32
  }
  func.func @transform_1(%arg0: i32) -> (i32, i32) {
    %c0_i32 = arith.constant 0 : i32
    %c0_i32_0 = arith.constant 0 : i32
    %c0_i32_1 = arith.constant 0 : i32
    return %c0_i32, %c0_i32_0 : i32, i32
  }
  func.func @transform_2(%arg0: i32) -> (i32, i32) {
    %c0_i32 = arith.constant 0 : i32
    %c0_i32_0 = arith.constant 0 : i32
    %c0_i32_1 = arith.constant 0 : i32
    return %c0_i32, %c0_i32_0 : i32, i32
  }
  func.func @transform_3(%arg0: i32) -> (i32, i32) {
    %c0_i32 = arith.constant 0 : i32
    %c0_i32_0 = arith.constant 0 : i32
    %c0_i32_1 = arith.constant 0 : i32
    return %c0_i32, %c0_i32_0 : i32, i32
  }
  func.func @transform_4(%arg0: i32) -> (i32, i32) {
    %c0_i32 = arith.constant 0 : i32
    %c0_i32_0 = arith.constant 0 : i32
    %c0_i32_1 = arith.constant 0 : i32
    return %c0_i32, %c0_i32_0 : i32, i32
  }
  func.func @transform_5(%arg0: i32) -> (i32, i32) {
    %c0_i32 = arith.constant 0 : i32
    %c0_i32_0 = arith.constant 0 : i32
    return %arg0, %c0_i32 : i32, i32
  }
}

</mosaic_0001>

<llo_original>
// kernel: tpu_custom_call.1
$region0: #{tpu_custom_call.1}
  #allocation0 [shape = 'u32[]', space=smem, size = 0x4, offset = 0x4, fixed_abs, tag = 'smem constant byte address 0x4 - core index']
  #allocation1 [shape = 'u32[144,128]{1,0:T(1,128)}', space=vmem, size = 0x12000, scoped, tag = 'internal scratch']
  %s0 = inlined_call_operand.hbm [shape: bf16[8,32], index: 0, kind: input, shape index: {}]
  %s1 = inlined_call_operand.hbm [shape: bf16[32,512], index: 1, kind: input, shape index: {}]
  %s2 = inlined_call_operand.hbm [shape: f32[1,512], index: 2, kind: input, shape index: {}]
  %s3 = inlined_call_operand.hbm [shape: bf16[512,128], index: 3, kind: input, shape index: {}]
  %s4 = inlined_call_operand.vmem [shape: f32[1,128], index: 4, kind: input, shape index: {}]
  %s5 = inlined_call_operand.hbm [shape: f32[8,128], index: 5, kind: output, shape index: {}]
  %s6 = sld [smem:[#allocation0]]
  $region46: #{tpu_custom_call.1} parent=0
    _
  %s8 = ssub.s32 1, %s6
  %s9 = scalar_select 0, %s8, %s6
  $region1: #{tpu_custom_call.1} parent=0
    #allocation2 [shape = 'u8[2048]{0}', space=vmem, size = 0x800, scoped, tag = 'input window, operand 0, single buffered']
    #allocation3 [shape = 's32[1]{0}', space=sflag, size = 0x4, scoped, tag = 'scoped memory for tpu_custom_call.1']
    #allocation4 [shape = 's32[1]{0}', space=sflag, size = 0x4, scoped, tag = 'scoped memory for tpu_custom_call.1']
    #allocation5 [shape = 'u8[32768]{0}', space=vmem, size = 0x8000, scoped, tag = 'input window, operand 1, single buffered']
    #allocation6 [shape = 's32[1]{0}', space=sflag, size = 0x4, scoped, tag = 'scoped memory for tpu_custom_call.1']
    #allocation7 [shape = 'u8[2048]{0}', space=vmem, size = 0x800, scoped, tag = 'input window, operand 2, single buffered']
    #allocation8 [shape = 'u8[131072]{0}', space=vmem, size = 0x20000, scoped, tag = 'input window, operand 3, single buffered']
    #allocation9 [shape = 's32[1]{0}', space=sflag, size = 0x4, scoped, tag = 'scoped memory for tpu_custom_call.1']
    #allocation10 [shape = 'u8[4096]{0}', space=vmem, size = 0x1000, scoped, tag = 'output window, operand 0, single buffered']
    %10 = vsyncpa [#allocation3], 0
    %11 = vsyncpa [#allocation6], 0
    %12 = vsyncpa [#allocation9], 0
    %13 = vsyncpa [#allocation4], 0
    // Predicated region
    $region2: #{tpu_custom_call.1} parent=1 // pred_check
      _
    $region3: #{tpu_custom_call.1} parent=1 // pred_check_branch
      %15 = sbr.rel (0) target = $region5
    $region4: #{tpu_custom_call.1} parent=1 // pred_region
      %s17 = ssub.s32 64, 64
      %18 = vsyncadd [#allocation3], %s17
      %s20 = sshll.u32 [#allocation2], 4
      %s21 = int_to_ptr.vmem [resolvable:$true] %s20
      %23 = dma.hbm_to_vmem [thread:$0]  %s0, 64, %s21, [#allocation3]
    $region5: #{tpu_custom_call.1} parent=1 // pred_fallthru
      _
    // Predicated region
    $region6: #{tpu_custom_call.1} parent=1 // pred_check
      _
    $region7: #{tpu_custom_call.1} parent=1 // pred_check_branch
      %25 = sbr.rel (0) target = $region9
    $region8: #{tpu_custom_call.1} parent=1 // pred_region
      %s27 = ssub.s32 1024, 1024
      %28 = vsyncadd [#allocation6], %s27
      %s29 = sshll.u32 [#allocation5], 4
      %s30 = int_to_ptr.vmem [resolvable:$true] %s29
      %35 = dma.hbm_to_vmem [thread:$0]  %s1, 1024, %s30, [#allocation6], 256, 256, 16
    $region9: #{tpu_custom_call.1} parent=1 // pred_fallthru
      _
    // Predicated region
    $region10: #{tpu_custom_call.1} parent=1 // pred_check
      _
    $region11: #{tpu_custom_call.1} parent=1 // pred_check_branch
      %37 = sbr.rel (0) target = $region13
    $region12: #{tpu_custom_call.1} parent=1 // pred_region
      %s39 = ssub.s32 64, 64
      %40 = vsyncadd [#allocation6], %s39
      %s42 = sshll.u32 [#allocation7], 4
      %s43 = int_to_ptr.vmem [resolvable:$true] %s42
      %45 = dma.hbm_to_vmem [thread:$0]  %s2, 64, %s43, [#allocation6]
    $region13: #{tpu_custom_call.1} parent=1 // pred_fallthru
      _
    // Predicated region
    $region14: #{tpu_custom_call.1} parent=1 // pred_check
      _
    $region15: #{tpu_custom_call.1} parent=1 // pred_check_branch
      %47 = sbr.rel (0) target = $region17
    $region16: #{tpu_custom_call.1} parent=1 // pred_region
      %s49 = ssub.s32 4096, 4096
      %50 = vsyncadd [#allocation9], %s49
      %s51 = sshll.u32 [#allocation8], 4
      %s52 = int_to_ptr.vmem [resolvable:$true] %s51
      %57 = dma.hbm_to_vmem [thread:$0]  %s3, 4096, %s52, [#allocation9], 64, 64, 4
    $region17: #{tpu_custom_call.1} parent=1 // pred_fallthru
      _
    // Predicated region
    $region18: #{tpu_custom_call.1} parent=1 // pred_check
      _
    $region19: #{tpu_custom_call.1} parent=1 // pred_check_branch
      %59 = sbr.rel (0) target = $region21
    $region20: #{tpu_custom_call.1} parent=1 // pred_region
      _
    $region21: #{tpu_custom_call.1} parent=1 // pred_fallthru
      _
    // Predicated region
    $region22: #{tpu_custom_call.1} parent=1 // pred_check
      _
    $region23: #{tpu_custom_call.1} parent=1 // pred_check_branch
      %61 = sbr.rel (0) target = $region25
    $region24: #{tpu_custom_call.1} parent=1 // pred_region
      %62 = dma.done [#allocation3], 64
    $region25: #{tpu_custom_call.1} parent=1 // pred_fallthru
      _
    // Predicated region
    $region26: #{tpu_custom_call.1} parent=1 // pred_check
      _
    $region27: #{tpu_custom_call.1} parent=1 // pred_check_branch
      %64 = sbr.rel (0) target = $region29
    $region28: #{tpu_custom_call.1} parent=1 // pred_region
      %65 = dma.done [#allocation6], 1024
    $region29: #{tpu_custom_call.1} parent=1 // pred_fallthru
      _
    // Predicated region
    $region30: #{tpu_custom_call.1} parent=1 // pred_check
      _
    $region31: #{tpu_custom_call.1} parent=1 // pred_check_branch
      %67 = sbr.rel (0) target = $region33
    $region32: #{tpu_custom_call.1} parent=1 // pred_region
      %68 = dma.done [#allocation6], 64
    $region33: #{tpu_custom_call.1} parent=1 // pred_fallthru
      _
    // Predicated region
    $region34: #{tpu_custom_call.1} parent=1 // pred_check
      _
    $region35: #{tpu_custom_call.1} parent=1 // pred_check_branch
      %70 = sbr.rel (0) target = $region37
    $region36: #{tpu_custom_call.1} parent=1 // pred_region
      %71 = dma.done [#allocation9], 4096
    $region37: #{tpu_custom_call.1} parent=1 // pred_fallthru
      _
    %v73 = vld [vmem:[#allocation2] sm:$0xf]
    %v74 = vld [vmem:[#allocation5] sm:$0xff]
    %v75 = vld [vmem:[#allocation5 + $0x8] sm:$0xff]
    %v76 = vld [vmem:[#allocation5 + $0x10] sm:$0xff]
    %v77 = vld [vmem:[#allocation5 + $0x18] sm:$0xff]
    %v78 = vld [vmem:[#allocation5 + $0x20] sm:$0xff]
    %v79 = vld [vmem:[#allocation5 + $0x28] sm:$0xff]
    %v80 = vld [vmem:[#allocation5 + $0x30] sm:$0xff]
    %v81 = vld [vmem:[#allocation5 + $0x38] sm:$0xff]
    %v82 = vld [vmem:[#allocation7] sm:$0xf]
    %v84 = vlaneseq
    %v85 = vshrl.u32 %v84, 7
    %v86 = vsub.s32 0, %v85
    %v87 = vrot.slane %v82, %v86
    %v88 = vlaneseq
    %v89 = vshrl.u32 %v88, 7
    %v90 = vsub.s32 1, %v89
    %v91 = vrot.slane %v82, %v90
    %v92 = vlaneseq
    %v93 = vshrl.u32 %v92, 7
    %v94 = vsub.s32 2, %v93
    %v95 = vrot.slane %v82, %v94
    %v96 = vlaneseq
    %v97 = vshrl.u32 %v96, 7
    %v98 = vsub.s32 3, %v97
    %v99 = vrot.slane %v82, %v98
    %v112 = vunpack.c.l.b16 %v74
    %v113 = vunpack.c.h.b16 %v74
    %v114 = vunpack.c.l.b16 %v75
    %v115 = vunpack.c.h.b16 %v75
    %v116 = vunpack.c.l.b16 %v76
    %v117 = vunpack.c.h.b16 %v76
    %v118 = vunpack.c.l.b16 %v77
    %v119 = vunpack.c.h.b16 %v77
    %v120 = vunpack.c.l.b16 %v78
    %v121 = vunpack.c.h.b16 %v78
    %v122 = vunpack.c.l.b16 %v79
    %v123 = vunpack.c.h.b16 %v79
    %v124 = vunpack.c.l.b16 %v80
    %v125 = vunpack.c.h.b16 %v80
    %v126 = vunpack.c.l.b16 %v81
    %v127 = vunpack.c.h.b16 %v81
    %v128 = vpack.c.b16 %v116, %v112
    %v129 = vpack.c.b16 %v117, %v113
    %v130 = vpack.c.b16 %v118, %v114
    %v131 = vpack.c.b16 %v119, %v115
    %v132 = vpack.c.b16 %v124, %v120
    %v133 = vpack.c.b16 %v125, %v121
    %v134 = vpack.c.b16 %v126, %v122
    %v135 = vpack.c.b16 %v127, %v123
    %vm144 = vcmask 261120
    %v146 = vsel %vm144, %v73, 0
    %148 = vmatprep.subr.bf16.mxu0 0
    %149 = vmatpush1.bf16.msra.mxu0 0
    %150 = vmatprep.subr.bf16.mxu0 0
    %151 = vmatpush1.bf16.msra.mxu0 0
    %152 = vmatprep.subr.bf16.mxu0 0
    %153 = vmatpush1.bf16.msra.mxu0 0
    %154 = vmatprep.subr.bf16.mxu0 0
    %155 = vmatpush1.bf16.msra.mxu0 0
    %156 = vmatprep.subr.bf16.mxu0 0
    %157 = vmatpush1.bf16.msra.mxu0 0
    %158 = vmatprep.subr.bf16.mxu0 0
    %159 = vmatpush1.bf16.msra.mxu0 0
    %160 = vmatprep.subr.bf16.mxu0 %v133
    %161 = vmatpush1.bf16.msra.mxu0 %v132
    %162 = vmatprep.subr.bf16.mxu0 %v129
    %163 = vmatpush1.bf16.msra.mxu0 %v128
    %164 = vmatprep.subr.bf16.mxu0 0
    %165 = vmatpush2.bf16.msra.mxu0 0
    %166 = vmatprep.subr.bf16.mxu0 0
    %167 = vmatpush2.bf16.msra.mxu0 0
    %168 = vmatprep.subr.bf16.mxu0 0
    %169 = vmatpush2.bf16.msra.mxu0 0
    %170 = vmatprep.subr.bf16.mxu0 0
    %171 = vmatpush2.bf16.msra.mxu0 0
    %172 = vmatprep.subr.bf16.mxu0 0
    %173 = vmatpush2.bf16.msra.mxu0 0
    %174 = vmatprep.subr.bf16.mxu0 0
    %175 = vmatpush2.bf16.msra.mxu0 0
    %176 = vmatprep.subr.bf16.mxu0 0
    %177 = vmatpush2.bf16.msra.mxu0 0
    %178 = vmatprep.subr.bf16.mxu0 0
    %179 = vmatpush2.bf16.msra.mxu0 0
    %180 = vmatprep.mubr.bf16.mxu0 0
    %181 = vmatmul.mubr.bf16.gmra.mxu0 %v146
    %v182 = vpop.f32.mrf.mxu0
    %v183 = vadd.f32 %v87, %v182
    %v184 = vpop.f32.mrf.mxu0
    %v185 = vadd.f32 %v91, %v184
    %v186 = vpop.f32.mrf.mxu0
    %v187 = vpop.f32.mrf.mxu0
    %188 = vdwg.mxu0
    %189 = vmatprep.subr.bf16.mxu0 0
    %190 = vmatpush1.bf16.msra.mxu0 0
    %191 = vmatprep.subr.bf16.mxu0 0
    %192 = vmatpush1.bf16.msra.mxu0 0
    %193 = vmatprep.subr.bf16.mxu0 0
    %194 = vmatpush1.bf16.msra.mxu0 0
    %195 = vmatprep.subr.bf16.mxu0 0
    %196 = vmatpush1.bf16.msra.mxu0 0
    %197 = vmatprep.subr.bf16.mxu0 0
    %198 = vmatpush1.bf16.msra.mxu0 0
    %199 = vmatprep.subr.bf16.mxu0 0
    %200 = vmatpush1.bf16.msra.mxu0 0
    %201 = vmatprep.subr.bf16.mxu0 %v135
    %202 = vmatpush1.bf16.msra.mxu0 %v134
    %203 = vmatprep.subr.bf16.mxu0 %v131
    %204 = vmatpush1.bf16.msra.mxu0 %v130
    %205 = vmatprep.subr.bf16.mxu0 0
    %206 = vmatpush2.bf16.msra.mxu0 0
    %207 = vmatprep.subr.bf16.mxu0 0
    %208 = vmatpush2.bf16.msra.mxu0 0
    %209 = vmatprep.subr.bf16.mxu0 0
    %210 = vmatpush2.bf16.msra.mxu0 0
    %211 = vmatprep.subr.bf16.mxu0 0
    %212 = vmatpush2.bf16.msra.mxu0 0
    %213 = vmatprep.subr.bf16.mxu0 0
    %214 = vmatpush2.bf16.msra.mxu0 0
    %215 = vmatprep.subr.bf16.mxu0 0
    %216 = vmatpush2.bf16.msra.mxu0 0
    %217 = vmatprep.subr.bf16.mxu0 0
    %218 = vmatpush2.bf16.msra.mxu0 0
    %219 = vmatprep.subr.bf16.mxu0 0
    %220 = vmatpush2.bf16.msra.mxu0 0
    %221 = vmatprep.mubr.bf16.mxu0 0
    %222 = vmatmul.mubr.bf16.gmra.mxu0 %v146
    %v223 = vpop.f32.mrf.mxu0
    %v224 = vadd.f32 %v95, %v223
    %v225 = vpop.f32.mrf.mxu0
    %v226 = vadd.f32 %v99, %v225
    %v227 = vpop.f32.mrf.mxu0
    %v228 = vpop.f32.mrf.mxu0
    %229 = vdwg.mxu0
    %vm230 = vcmp.ge.f32.partialorder %v183, 0.0
    %vm231 = vcmp.ge.f32.partialorder %v185, 0.0
    %vm232 = vcmp.ge.f32.partialorder %v224, 0.0
    %vm233 = vcmp.ge.f32.partialorder %v226, 0.0
    %v234 = vmul.f32 %v183, 0.2
    %v235 = vmul.f32 %v185, 0.2
    %v236 = vmul.f32 %v224, 0.2
    %v237 = vmul.f32 %v226, 0.2
    %v238 = vsel %vm230, %v183, %v234
    %v239 = vsel %vm231, %v185, %v235
    %v240 = vsel %vm232, %v224, %v236
    %v241 = vsel %vm233, %v226, %v237
    %v242 = vpack.c.bf16 %v238, %v238
    %v243 = vpack.c.bf16 %v239, %v239
    %v244 = vpack.c.bf16 %v240, %v240
    %v245 = vpack.c.bf16 %v241, %v241
    %v246 = vld [vmem:[#allocation8] sm:$0xf]
    %v247 = vld [vmem:[#allocation8 + $0x4] sm:$0xf]
    %v248 = vld [vmem:[#allocation8 + $0x8] sm:$0xf]
    %v249 = vld [vmem:[#allocation8 + $0xc] sm:$0xf]
    %v250 = vld [vmem:[#allocation8 + $0x10] sm:$0xf]
    %v251 = vld [vmem:[#allocation8 + $0x14] sm:$0xf]
    %v252 = vld [vmem:[#allocation8 + $0x18] sm:$0xf]
    %v253 = vld [vmem:[#allocation8 + $0x1c] sm:$0xf]
    %v254 = vld [vmem:[#allocation8 + $0x20] sm:$0xf]
    %v255 = vld [vmem:[#allocation8 + $0x24] sm:$0xf]
    %v256 = vld [vmem:[#allocation8 + $0x28] sm:$0xf]
    %v257 = vld [vmem:[#allocation8 + $0x2c] sm:$0xf]
    %v258 = vld [vmem:[#allocation8 + $0x30] sm:$0xf]
    %v259 = vld [vmem:[#allocation8 + $0x34] sm:$0xf]
    %v260 = vld [vmem:[#allocation8 + $0x38] sm:$0xf]
    %v261 = vld [vmem:[#allocation8 + $0x3c] sm:$0xf]
    %v262 = vld [vmem:[#allocation8 + $0x40] sm:$0xf]
    %v263 = vld [vmem:[#allocation8 + $0x44] sm:$0xf]
    %v264 = vld [vmem:[#allocation8 + $0x48] sm:$0xf]
    %v265 = vld [vmem:[#allocation8 + $0x4c] sm:$0xf]
    %v266 = vld [vmem:[#allocation8 + $0x50] sm:$0xf]
    %v267 = vld [vmem:[#allocation8 + $0x54] sm:$0xf]
    %v268 = vld [vmem:[#allocation8 + $0x58] sm:$0xf]
    %v269 = vld [vmem:[#allocation8 + $0x5c] sm:$0xf]
    %v270 = vld [vmem:[#allocation8 + $0x60] sm:$0xf]
    %v271 = vld [vmem:[#allocation8 + $0x64] sm:$0xf]
    %v272 = vld [vmem:[#allocation8 + $0x68] sm:$0xf]
    %v273 = vld [vmem:[#allocation8 + $0x6c] sm:$0xf]
    %v274 = vld [vmem:[#allocation8 + $0x70] sm:$0xf]
    %v275 = vld [vmem:[#allocation8 + $0x74] sm:$0xf]
    %v276 = vld [vmem:[#allocation8 + $0x78] sm:$0xf]
    %v277 = vld [vmem:[#allocation8 + $0x7c] sm:$0xf]
    %v278 = vld [vmem:[#allocation8 + $0x80] sm:$0xf]
    %v279 = vld [vmem:[#allocation8 + $0x84] sm:$0xf]
    %v280 = vld [vmem:[#allocation8 + $0x88] sm:$0xf]
    %v281 = vld [vmem:[#allocation8 + $0x8c] sm:$0xf]
    %v282 = vld [vmem:[#allocation8 + $0x90] sm:$0xf]
    %v283 = vld [vmem:[#allocation8 + $0x94] sm:$0xf]
    %v284 = vld [vmem:[#allocation8 + $0x98] sm:$0xf]
    %v285 = vld [vmem:[#allocation8 + $0x9c] sm:$0xf]
    %v286 = vld [vmem:[#allocation8 + $0xa0] sm:$0xf]
    %v287 = vld [vmem:[#allocation8 + $0xa4] sm:$0xf]
    %v288 = vld [vmem:[#allocation8 + $0xa8] sm:$0xf]
    %v289 = vld [vmem:[#allocation8 + $0xac] sm:$0xf]
    %v290 = vld [vmem:[#allocation8 + $0xb0] sm:$0xf]
    %v291 = vld [vmem:[#allocation8 + $0xb4] sm:$0xf]
    %v292 = vld [vmem:[#allocation8 + $0xb8] sm:$0xf]
    %v293 = vld [vmem:[#allocation8 + $0xbc] sm:$0xf]
    %v294 = vld [vmem:[#allocation8 + $0xc0] sm:$0xf]
    %v295 = vld [vmem:[#allocation8 + $0xc4] sm:$0xf]
    %v296 = vld [vmem:[#allocation8 + $0xc8] sm:$0xf]
    %v297 = vld [vmem:[#allocation8 + $0xcc] sm:$0xf]
    %v298 = vld [vmem:[#allocation8 + $0xd0] sm:$0xf]
    %v299 = vld [vmem:[#allocation8 + $0xd4] sm:$0xf]
    %v300 = vld [vmem:[#allocation8 + $0xd8] sm:$0xf]
    %v301 = vld [vmem:[#allocation8 + $0xdc] sm:$0xf]
    %v302 = vld [vmem:[#allocation8 + $0xe0] sm:$0xf]
    %v303 = vld [vmem:[#allocation8 + $0xe4] sm:$0xf]
    %v304 = vld [vmem:[#allocation8 + $0xe8] sm:$0xf]
    %v305 = vld [vmem:[#allocation8 + $0xec] sm:$0xf]
    %v306 = vld [vmem:[#allocation8 + $0xf0] sm:$0xf]
    %v307 = vld [vmem:[#allocation8 + $0xf4] sm:$0xf]
    %v308 = vld [vmem:[#allocation8 + $0xf8] sm:$0xf]
    %v309 = vld [vmem:[#allocation8 + $0xfc] sm:$0xf]
    %v310 = vld [vmem:[%s4] sm:$0x1]
    %v312 = vlaneseq
    %v313 = vshrl.u32 %v312, 7
    %v314 = vsub.s32 0, %v313
    %v315 = vrot.slane %v310, %v314
    %v381 = vunpack.c.l.b16 %v246
    %v382 = vunpack.c.l.b16 %v247
    %v383 = vunpack.c.l.b16 %v248
    %v384 = vunpack.c.l.b16 %v249
    %v385 = vunpack.c.l.b16 %v250
    %v386 = vunpack.c.l.b16 %v251
    %v387 = vunpack.c.l.b16 %v252
    %v388 = vunpack.c.l.b16 %v253
    %v389 = vunpack.c.l.b16 %v254
    %v390 = vunpack.c.l.b16 %v255
    %v391 = vunpack.c.l.b16 %v256
    %v392 = vunpack.c.l.b16 %v257
    %v393 = vunpack.c.l.b16 %v258
    %v394 = vunpack.c.l.b16 %v259
    %v395 = vunpack.c.l.b16 %v260
    %v396 = vunpack.c.l.b16 %v261
    %v397 = vunpack.c.l.b16 %v262
    %v398 = vunpack.c.l.b16 %v263
    %v399 = vunpack.c.l.b16 %v264
    %v400 = vunpack.c.l.b16 %v265
    %v401 = vunpack.c.l.b16 %v266
    %v402 = vunpack.c.l.b16 %v267
    %v403 = vunpack.c.l.b16 %v268
    %v404 = vunpack.c.l.b16 %v269
    %v405 = vunpack.c.l.b16 %v270
    %v406 = vunpack.c.l.b16 %v271
    %v407 = vunpack.c.l.b16 %v272
    %v408 = vunpack.c.l.b16 %v273
    %v409 = vunpack.c.l.b16 %v274
    %v410 = vunpack.c.l.b16 %v275
    %v411 = vunpack.c.l.b16 %v276
    %v412 = vunpack.c.l.b16 %v277
    %v413 = vunpack.c.l.b16 %v278
    %v414 = vunpack.c.l.b16 %v279
    %v415 = vunpack.c.l.b16 %v280
    %v416 = vunpack.c.l.b16 %v281
    %v417 = vunpack.c.l.b16 %v282
    %v418 = vunpack.c.l.b16 %v283
    %v419 = vunpack.c.l.b16 %v284
    %v420 = vunpack.c.l.b16 %v285
    %v421 = vunpack.c.l.b16 %v286
    %v422 = vunpack.c.l.b16 %v287
    %v423 = vunpack.c.l.b16 %v288
    %v424 = vunpack.c.l.b16 %v289
    %v425 = vunpack.c.l.b16 %v290
    %v426 = vunpack.c.l.b16 %v291
    %v427 = vunpack.c.l.b16 %v292
    %v428 = vunpack.c.l.b16 %v293
    %v429 = vunpack.c.l.b16 %v294
    %v430 = vunpack.c.l.b16 %v295
    %v431 = vunpack.c.l.b16 %v296
    %v432 = vunpack.c.l.b16 %v297
    %v433 = vunpack.c.l.b16 %v298
    %v434 = vunpack.c.l.b16 %v299
    %v435 = vunpack.c.l.b16 %v300
    %v436 = vunpack.c.l.b16 %v301
    %v437 = vunpack.c.l.b16 %v302
    %v438 = vunpack.c.l.b16 %v303
    %v439 = vunpack.c.l.b16 %v304
    %v440 = vunpack.c.l.b16 %v305
    %v441 = vunpack.c.l.b16 %v306
    %v442 = vunpack.c.l.b16 %v307
    %v443 = vunpack.c.l.b16 %v308
    %v444 = vunpack.c.l.b16 %v309
    %v445 = vpack.c.b16 %v382, %v381
    %v446 = vpack.c.b16 %v384, %v383
    %v447 = vpack.c.b16 %v386, %v385
    %v448 = vpack.c.b16 %v388, %v387
    %v449 = vpack.c.b16 %v390, %v389
    %v450 = vpack.c.b16 %v392, %v391
    %v451 = vpack.c.b16 %v394, %v393
    %v452 = vpack.c.b16 %v396, %v395
    %v453 = vpack.c.b16 %v398, %v397
    %v454 = vpack.c.b16 %v400, %v399
    %v455 = vpack.c.b16 %v402, %v401
    %v456 = vpack.c.b16 %v404, %v403
    %v457 = vpack.c.b16 %v406, %v405
    %v458 = vpack.c.b16 %v408, %v407
    %v459 = vpack.c.b16 %v410, %v409
    %v460 = vpack.c.b16 %v412, %v411
    %v461 = vpack.c.b16 %v414, %v413
    %v462 = vpack.c.b16 %v416, %v415
    %v463 = vpack.c.b16 %v418, %v417
    %v464 = vpack.c.b16 %v420, %v419
    %v465 = vpack.c.b16 %v422, %v421
    %v466 = vpack.c.b16 %v424, %v423
    %v467 = vpack.c.b16 %v426, %v425
    %v468 = vpack.c.b16 %v428, %v427
    %v469 = vpack.c.b16 %v430, %v429
    %v470 = vpack.c.b16 %v432, %v431
    %v471 = vpack.c.b16 %v434, %v433
    %v472 = vpack.c.b16 %v436, %v435
    %v473 = vpack.c.b16 %v438, %v437
    %v474 = vpack.c.b16 %v440, %v439
    %v475 = vpack.c.b16 %v442, %v441
    %v476 = vpack.c.b16 %v444, %v443
    %509 = vmatprep.subr.bf16.mxu0 0
    %510 = vmatpush1.bf16.msra.mxu0 %v452
    %511 = vmatprep.subr.bf16.mxu0 0
    %512 = vmatpush1.bf16.msra.mxu0 %v451
    %513 = vmatprep.subr.bf16.mxu0 0
    %514 = vmatpush1.bf16.msra.mxu0 %v450
    %515 = vmatprep.subr.bf16.mxu0 0
    %516 = vmatpush1.bf16.msra.mxu0 %v449
    %517 = vmatprep.subr.bf16.mxu0 0
    %518 = vmatpush1.bf16.msra.mxu0 %v448
    %519 = vmatprep.subr.bf16.mxu0 0
    %520 = vmatpush1.bf16.msra.mxu0 %v447
    %521 = vmatprep.subr.bf16.mxu0 0
    %522 = vmatpush1.bf16.msra.mxu0 %v446
    %523 = vmatprep.subr.bf16.mxu0 0
    %524 = vmatpush1.bf16.msra.mxu0 %v445
    %525 = vmatprep.subr.bf16.mxu0 0
    %526 = vmatpush2.bf16.msra.mxu0 %v460
    %527 = vmatprep.subr.bf16.mxu0 0
    %528 = vmatpush2.bf16.msra.mxu0 %v459
    %529 = vmatprep.subr.bf16.mxu0 0
    %530 = vmatpush2.bf16.msra.mxu0 %v458
    %531 = vmatprep.subr.bf16.mxu0 0
    %532 = vmatpush2.bf16.msra.mxu0 %v457
    %533 = vmatprep.subr.bf16.mxu0 0
    %534 = vmatpush2.bf16.msra.mxu0 %v456
    %535 = vmatprep.subr.bf16.mxu0 0
    %536 = vmatpush2.bf16.msra.mxu0 %v455
    %537 = vmatprep.subr.bf16.mxu0 0
    %538 = vmatpush2.bf16.msra.mxu0 %v454
    %539 = vmatprep.subr.bf16.mxu0 0
    %540 = vmatpush2.bf16.msra.mxu0 %v453
    %541 = vmatprep.mubr.bf16.mxu0 %v243
    %542 = vmatmul.mubr.bf16.gmra.mxu0 %v242
    %v543 = vpop.f32.mrf.mxu0
    %v544 = vadd.f32 %v315, %v543
    %v545 = vpop.f32.mrf.mxu0
    %v546 = vpop.f32.mrf.mxu0
    %v547 = vpop.f32.mrf.mxu0
    %548 = vdwg.mxu0
    %549 = vmatprep.subr.bf16.mxu0 0
    %550 = vmatpush1.bf16.msra.mxu0 %v468
    %551 = vmatprep.subr.bf16.mxu0 0
    %552 = vmatpush1.bf16.msra.mxu0 %v467
    %553 = vmatprep.subr.bf16.mxu0 0
    %554 = vmatpush1.bf16.msra.mxu0 %v466
    %555 = vmatprep.subr.bf16.mxu0 0
    %556 = vmatpush1.bf16.msra.mxu0 %v465
    %557 = vmatprep.subr.bf16.mxu0 0
    %558 = vmatpush1.bf16.msra.mxu0 %v464
    %559 = vmatprep.subr.bf16.mxu0 0
    %560 = vmatpush1.bf16.msra.mxu0 %v463
    %561 = vmatprep.subr.bf16.mxu0 0
    %562 = vmatpush1.bf16.msra.mxu0 %v462
    %563 = vmatprep.subr.bf16.mxu0 0
    %564 = vmatpush1.bf16.msra.mxu0 %v461
    %565 = vmatprep.subr.bf16.mxu0 0
    %566 = vmatpush2.bf16.msra.mxu0 %v476
    %567 = vmatprep.subr.bf16.mxu0 0
    %568 = vmatpush2.bf16.msra.mxu0 %v475
    %569 = vmatprep.subr.bf16.mxu0 0
    %570 = vmatpush2.bf16.msra.mxu0 %v474
    %571 = vmatprep.subr.bf16.mxu0 0
    %572 = vmatpush2.bf16.msra.mxu0 %v473
    %573 = vmatprep.subr.bf16.mxu0 0
    %574 = vmatpush2.bf16.msra.mxu0 %v472
    %575 = vmatprep.subr.bf16.mxu0 0
    %576 = vmatpush2.bf16.msra.mxu0 %v471
    %577 = vmatprep.subr.bf16.mxu0 0
    %578 = vmatpush2.bf16.msra.mxu0 %v470
    %579 = vmatprep.subr.bf16.mxu0 0
    %580 = vmatpush2.bf16.msra.mxu0 %v469
    %581 = vmatprep.mubr.bf16.mxu0 %v245
    %582 = vmatmul.mubr.bf16.gmra.mxu0 %v244
    %v583 = vpop.f32.mrf.mxu0
    %v584 = vadd.f32 %v544, %v583
    %v585 = vpop.f32.mrf.mxu0
    %v586 = vpop.f32.mrf.mxu0
    %v587 = vpop.f32.mrf.mxu0
    %588 = vdwg.mxu0
    %589 = vst [vmem:[#allocation10] sm:$0xff] %v584
    // Predicated region
    $region38: #{tpu_custom_call.1} parent=1 // pred_check
      _
    $region39: #{tpu_custom_call.1} parent=1 // pred_check_branch
      %591 = sbr.rel (0) target = $region41
    $region40: #{tpu_custom_call.1} parent=1 // pred_region
      %s593 = ssub.s32 128, 128
      %594 = vsyncadd [#allocation4], %s593
      %s596 = sshll.u32 [#allocation10], 4
      %s597 = int_to_ptr.vmem [resolvable:$true] %s596
      %599 = dma.vmem_to_hbm [thread:$0]  %s597, 128, %s5, [#allocation4]
    $region41: #{tpu_custom_call.1} parent=1 // pred_fallthru
      _
    // Predicated region
    $region42: #{tpu_custom_call.1} parent=1 // pred_check
      _
    $region43: #{tpu_custom_call.1} parent=1 // pred_check_branch
      %601 = sbr.rel (0) target = $region45
    $region44: #{tpu_custom_call.1} parent=1 // pred_region
      %602 = dma.done [#allocation4], 128
    $region45: #{tpu_custom_call.1} parent=1 // pred_fallthru
      _
    %603 = vsyncpa [#allocation3], 1
    %604 = vsyncpa [#allocation6], 1
    %605 = vsyncpa [#allocation9], 1
    %606 = vsyncpa [#allocation4], 1

</llo_original>
